<compile_context>
chip_gen: v6e
topology: v6e:2x2x1
jax: 0.10.0
libtpu: 0.0.40
codegen_flags: <defaults>
</compile_context>

<pallas_src>
import jax
import jax.numpy as jnp
from jax.experimental import pallas as pl
from jax.experimental.pallas import tpu as pltpu


def _round_up(x, m):
    return (x + m - 1) // m * m


def _vmem_budget_bytes():
    # Generation-aware VMEM budget: 3/4 of physical capacity
    # (128 MiB -> 96 MiB on v5e/v6e, 64 MiB -> 48 MiB on v7x).
    cap = 64 << 20  # conservative fallback = v7x per-core VMEM
    try:
        info = pltpu.get_tpu_info()
        cap = int(getattr(info, "vmem_capacity_bytes", cap))
    except Exception:
        pass
    return (3 * cap) // 4


# ----------------------------- kernels -----------------------------

def _dense_resident_kernel(x_ref, w1_ref, b1_ref, w2_ref, b2_ref, o_ref):
    # Cast of x to the MXU feed dtype happens here (VPU work, hidden under the MXU),
    # so the wrapper never makes an extra HBM pass over x.
    x = x_ref[...].astype(w1_ref.dtype)
    h = jnp.dot(x, w1_ref[...], preferred_element_type=jnp.float32) + b1_ref[...]
    h = h.astype(w2_ref.dtype)
    y = jnp.dot(h, w2_ref[...], preferred_element_type=jnp.float32) + b2_ref[...]
    o_ref[...] = y.astype(o_ref.dtype)


def _dense_kstream_kernel(x_ref, w1_ref, b1_ref, w2_ref, b2_ref, o_ref, acc_ref):
    # Grid = (batch tiles, K tiles); K is the trailing "arbitrary" axis.
    k = pl.program_id(1)

    @pl.when(k == 0)
    def _():
        acc_ref[...] = jnp.zeros_like(acc_ref)

    x = x_ref[...].astype(w1_ref.dtype)
    acc_ref[...] += jnp.dot(x, w1_ref[...], preferred_element_type=jnp.float32)

    @pl.when(k == pl.num_programs(1) - 1)
    def _():
        h = (acc_ref[...] + b1_ref[...]).astype(w2_ref.dtype)
        y = jnp.dot(h, w2_ref[...], preferred_element_type=jnp.float32) + b2_ref[...]
        o_ref[...] = y.astype(o_ref.dtype)


# ----------------------------- wrapper -----------------------------

def dense_forward(x, w1, b1, w2, b2, *, compute_dtype=jnp.bfloat16,
                  force_k_stream=False, k_block_cap=2048):
    """x: (B, in_channels, num_samples) (or any (B, ...)); returns (B, out_channels).

    Numerics: bf16 MXU feed with f32 accumulation/bias-add; output cast to x.dtype.
    """
    B = x.shape[0]
    x_flat = x.reshape(B, -1)              # flatten(start_dim=1); metadata-only
    d_in = x_flat.shape[1]
    hidden = w1.shape[1]
    d_out = w2.shape[1]
    out_dtype = x.dtype

    b1 = b1.reshape(1, hidden)
    b2 = b2.reshape(1, d_out)

    # Lane-dense output: pad out features to a multiple of 128 (unmasked vst).
    d_out_p = _round_up(d_out, 128)
    if d_out_p != d_out:
        w2 = jnp.pad(w2, ((0, 0), (0, d_out_p - d_out)))
        b2 = jnp.pad(b2, ((0, 0), (0, d_out_p - d_out)))

    # Weights as bf16 (small resident VMEM copies), biases f32; x stays in its
    # input dtype and is cast inside the kernel.
    w1_c = w1.astype(compute_dtype)
    w2_c = w2.astype(compute_dtype)
    b1_c = b1.astype(jnp.float32)
    b2_c = b2.astype(jnp.float32)

    x_isz = jnp.dtype(x_flat.dtype).itemsize
    o_isz = jnp.dtype(out_dtype).itemsize
    c_isz = jnp.dtype(compute_dtype).itemsize

    budget = _vmem_budget_bytes()

    # --- VMEM footprint estimates (double-buffered tiles + resident weights) ---
    def resident_bytes(tile_b, w_buf):
        weights = (d_in * hidden + hidden * d_out_p) * c_isz * w_buf
        biases = (hidden + d_out_p) * 4 * w_buf
        x_tiles = 2 * tile_b * d_in * x_isz
        o_tiles = 2 * tile_b * d_out_p * o_isz
        interm = tile_b * (d_in * c_isz + hidden * (4 + c_isz) + d_out_p * 4)
        return weights + biases + x_tiles + o_tiles + interm

    def kstream_bytes(tile_b, tk, w_buf):
        w1_tiles = 2 * tk * hidden * c_isz            # streamed, double-buffered
        resident = hidden * d_out_p * c_isz * w_buf + (hidden + d_out_p) * 4 * w_buf
        x_tiles = 2 * tile_b * tk * x_isz
        o_tiles = 2 * tile_b * d_out_p * o_isz
        acc = tile_b * hidden * 4
        interm = tile_b * (tk * c_isz + hidden * (4 + c_isz) + d_out_p * 4)
        return w1_tiles + resident + x_tiles + o_tiles + acc + interm

    # --- batch tile: biggest multiple of 256 that fits (>=256 fills the MXU and
    #     amortizes per-step overhead); small B uses one full-batch block.
    def pick_tile_b(fits):
        if B <= 256:
            return B
        tb = 256
        if not fits(tb):
            for cand in (128, 64, 32, 16, 8):
                tb = cand
                if fits(cand):
                    break
        else:
            for cand in (512, 768, 1024):
                if cand <= B and fits(cand):
                    tb = cand
        return tb

    def pick_tk(tile_b):
        best = None
        tk = 128
        while tk <= min(d_in, k_block_cap):
            if d_in % tk == 0 and kstream_bytes(tile_b, tk, 1) <= budget:
                best = tk
            tk += 128
        return best

    use_kstream = bool(force_k_stream)
    if not use_kstream:
        probe_tb = 256 if B > 256 else B
        if resident_bytes(probe_tb, 1) > budget and d_in % 128 == 0:
            use_kstream = True

    flops = 2 * B * (d_in * hidden + hidden * d_out_p)
    bytes_accessed = (B * d_in * x_isz
                      + (d_in * hidden + hidden * d_out_p) * c_isz
                      + (hidden + d_out_p) * 4
                      + B * d_out_p * o_isz)
    cost = pl.CostEstimate(flops=flops, transcendentals=0,
                           bytes_accessed=bytes_accessed)
    vmem_limit = int(budget)

    def build_resident(tile_b, single_buffer_weights):
        def const_spec(shape):
            if single_buffer_weights:
                return pl.BlockSpec(shape, lambda i: (0, 0),
                                    pipeline_mode=pl.Buffered(1))
            return pl.BlockSpec(shape, lambda i: (0, 0))

        return pl.pallas_call(
            _dense_resident_kernel,
            out_shape=jax.ShapeDtypeStruct((B, d_out_p), out_dtype),
            grid=(pl.cdiv(B, tile_b),),
            in_specs=[
                pl.BlockSpec((tile_b, d_in), lambda i: (i, 0)),   # x: tiled over batch
                const_spec((d_in, hidden)),                       # w1: resident
                const_spec((1, hidden)),                          # b1: resident
                const_spec((hidden, d_out_p)),                    # w2: resident
                const_spec((1, d_out_p)),                         # b2: resident
            ],
            out_specs=pl.BlockSpec((tile_b, d_out_p), lambda i: (i, 0)),
            compiler_params=pltpu.CompilerParams(
                dimension_semantics=("parallel",),
                vmem_limit_bytes=vmem_limit),
            cost_estimate=cost,
        )

    def build_kstream(tile_b, tk, single_buffer_weights):
        def const_spec(shape):
            if single_buffer_weights:
                return pl.BlockSpec(shape, lambda i, k: (0, 0),
                                    pipeline_mode=pl.Buffered(1))
            return pl.BlockSpec(shape, lambda i, k: (0, 0))

        return pl.pallas_call(
            _dense_kstream_kernel,
            out_shape=jax.ShapeDtypeStruct((B, d_out_p), out_dtype),
            grid=(pl.cdiv(B, tile_b), d_in // tk),
            in_specs=[
                pl.BlockSpec((tile_b, tk), lambda i, k: (i, k)),  # x: batch x K tiles
                pl.BlockSpec((tk, hidden), lambda i, k: (k, 0)),  # w1: streamed over K
                const_spec((1, hidden)),                          # b1: resident
                const_spec((hidden, d_out_p)),                    # w2: resident
                const_spec((1, d_out_p)),                         # b2: resident
            ],
            out_specs=pl.BlockSpec((tile_b, d_out_p), lambda i, k: (i, 0)),
            scratch_shapes=[pltpu.VMEM((tile_b, hidden), jnp.float32)],
            compiler_params=pltpu.CompilerParams(
                dimension_semantics=("parallel", "arbitrary"),
                vmem_limit_bytes=vmem_limit),
            cost_estimate=cost,
        )

    args = (x_flat, w1_c, b1_c, w2_c, b2_c)

    if use_kstream:
        tile_b = pick_tile_b(lambda tb: kstream_bytes(tb, 128, 1) <= budget)
        tk = pick_tk(tile_b)
        if tk is None:
            use_kstream = False

    if use_kstream:
        try:
            out_p = build_kstream(tile_b, tk, True)(*args)
        except Exception:
            out_p = build_kstream(tile_b, tk, False)(*args)
    else:
        tile_b = pick_tile_b(lambda tb: resident_bytes(tb, 1) <= budget)
        try:
            out_p = build_resident(tile_b, True)(*args)
        except Exception:
            out_p = build_resident(tile_b, False)(*args)

    return out_p[:, :d_out]


def init_params(key, num_samples, in_channels, out_channels, hidden=256,
                dtype=jnp.float32):
    d_in = in_channels * num_samples
    k1, k2, k3, k4 = jax.random.split(key, 4)
    # PyTorch Linear default init: U(-1/sqrt(fan_in), 1/sqrt(fan_in)).
    s1 = 1.0 / jnp.sqrt(d_in)
    s2 = 1.0 / jnp.sqrt(hidden)
    w1 = jax.random.uniform(k1, (d_in, hidden), dtype, -s1, s1)      # stored (in, out)
    b1 = jax.random.uniform(k2, (1, hidden), dtype, -s1, s1)
    w2 = jax.random.uniform(k3, (hidden, out_channels), dtype, -s2, s2)
    b2 = jax.random.uniform(k4, (1, out_channels), dtype, -s2, s2)
    return w1, b1, w2, b2


if __name__ == "__main__":
    key = jax.random.PRNGKey(0)
    kx, kp, kx2, kp2 = jax.random.split(key, 4)

    def ref_bf16(x, w1, b1, w2, b2):
        # Reference mirroring the kernel's bf16-feed / f32-accumulate scheme.
        xf = x.reshape(x.shape[0], -1)
        h = jnp.dot(xf.astype(jnp.bfloat16), w1.astype(jnp.bfloat16),
                    preferred_element_type=jnp.float32) + b1.reshape(1, -1)
        return jnp.dot(h.astype(jnp.bfloat16), w2.astype(jnp.bfloat16),
                       preferred_element_type=jnp.float32) + b2.reshape(1, -1)

    def ref_f32(x, w1, b1, w2, b2):
        # True f32 reference (PyTorch eval-mode semantics): looser tolerance
        # documents the bf16-MXU-feed numerical contract.
        xf = x.reshape(x.shape[0], -1)
        h = jnp.dot(xf, w1) + b1.reshape(1, -1)
        return jnp.dot(h, w2) + b2.reshape(1, -1)

    # --- test 1: resident-weight path (small shapes consistent with the module) ---
    batch, in_channels, num_samples, out_channels = 2, 4, 8, 16
    x = jax.random.normal(kx, (batch, in_channels, num_samples), dtype=jnp.float32)
    w1, b1, w2, b2 = init_params(kp, num_samples, in_channels, out_channels)

    out = jax.block_until_ready(dense_forward(x, w1, b1, w2, b2))
    assert out.shape == (batch, out_channels)
    assert out.dtype == x.dtype
    assert jnp.allclose(out, ref_bf16(x, w1, b1, w2, b2), atol=1e-3, rtol=1e-3), (
        float(jnp.max(jnp.abs(out - ref_bf16(x, w1, b1, w2, b2)))))
    assert jnp.allclose(out, ref_f32(x, w1, b1, w2, b2), atol=5e-2, rtol=5e-2), (
        float(jnp.max(jnp.abs(out - ref_f32(x, w1, b1, w2, b2)))))

    # --- test 2: K-streaming path (forced; exercises the large-d_in / v7x branch) ---
    batch2, in_channels2, num_samples2, out_channels2 = 16, 4, 128, 16
    x2 = jax.random.normal(kx2, (batch2, in_channels2, num_samples2), dtype=jnp.float32)
    w1b, b1b, w2b, b2b = init_params(kp2, num_samples2, in_channels2, out_channels2)
    out2 = jax.block_until_ready(
        dense_forward(x2, w1b, b1b, w2b, b2b, force_k_stream=True, k_block_cap=256))
    assert out2.shape == (batch2, out_channels2)
    assert out2.dtype == x2.dtype
    assert jnp.allclose(out2, ref_bf16(x2, w1b, b1b, w2b, b2b), atol=2e-3, rtol=2e-3), (
        float(jnp.max(jnp.abs(out2 - ref_bf16(x2, w1b, b1b, w2b, b2b)))))

    print("KERNEL_OK")
</pallas_src>

<mosaic_0001>
module attributes {stable_mosaic.version = 11 : i64} {
  func.func @_dense_resident_kernel(%arg0: i32, %arg1: memref<2x32xf32, #tpu.memory_space<vmem>>, %arg2: memref<32x256xbf16, #tpu.memory_space<vmem>>, %arg3: memref<1x256xf32, #tpu.memory_space<vmem>>, %arg4: memref<256x128xbf16, #tpu.memory_space<vmem>>, %arg5: memref<1x128xf32, #tpu.memory_space<vmem>>, %arg6: memref<2x128xf32, #tpu.memory_space<vmem>>) attributes {dimension_semantics = [#tpu.dimension_semantics<parallel>], iteration_bounds = array<i64: 1>, scalar_prefetch = 0 : i64, scratch_operands = 0 : i64, tpu.core_type = #tpu.core_type<tc>, window_params = [{transform_indices = @transform_0, window_bounds = array<i64: 2, 32>}, {pipeline_mode = #tpu.pipeline_mode<synchronous>, transform_indices = @transform_1, window_bounds = array<i64: 32, 256>}, {pipeline_mode = #tpu.pipeline_mode<synchronous>, transform_indices = @transform_2, window_bounds = array<i64: 1, 256>}, {pipeline_mode = #tpu.pipeline_mode<synchronous>, transform_indices = @transform_3, window_bounds = array<i64: 256, 128>}, {pipeline_mode = #tpu.pipeline_mode<synchronous>, transform_indices = @transform_4, window_bounds = array<i64: 1, 128>}, {transform_indices = @transform_5, window_bounds = array<i64: 2, 128>}]} {
    %c0 = arith.constant 0 : index
    %c0_0 = arith.constant 0 : index
    %0 = vector.load %arg1[%c0, %c0_0] : memref<2x32xf32, #tpu.memory_space<vmem>>, vector<2x32xf32>
    %1 = arith.truncf %0 : vector<2x32xf32> to vector<2x32xbf16>
    %c0_1 = arith.constant 0 : index
    %c0_2 = arith.constant 0 : index
    %2 = vector.load %arg2[%c0_1, %c0_2] : memref<32x256xbf16, #tpu.memory_space<vmem>>, vector<32x256xbf16>
    %cst = arith.constant dense<0.000000e+00> : vector<2x256xf32>
    %3 = tpu.matmul %1, %2, %cst {dimension_numbers = #tpu.dot_dimension_numbers<[1], [0], [0], [1], [0, 0, 1, 1], [], []>} : vector<2x32xbf16>, vector<32x256xbf16>, vector<2x256xf32> -> vector<2x256xf32>
    %c0_3 = arith.constant 0 : index
    %c0_4 = arith.constant 0 : index
    %4 = vector.load %arg3[%c0_3, %c0_4] : memref<1x256xf32, #tpu.memory_space<vmem>>, vector<1x256xf32>
    %5 = vector.broadcast %4 : vector<1x256xf32> to vector<2x256xf32>
    %6 = arith.addf %3, %5 : vector<2x256xf32>
    %7 = arith.truncf %6 : vector<2x256xf32> to vector<2x256xbf16>
    %c0_5 = arith.constant 0 : index
    %c0_6 = arith.constant 0 : index
    %8 = vector.load %arg4[%c0_5, %c0_6] : memref<256x128xbf16, #tpu.memory_space<vmem>>, vector<256x128xbf16>
    %cst_7 = arith.constant dense<0.000000e+00> : vector<2x128xf32>
    %9 = tpu.matmul %7, %8, %cst_7 {dimension_numbers = #tpu.dot_dimension_numbers<[1], [0], [0], [1], [0, 0, 1, 1], [], []>} : vector<2x256xbf16>, vector<256x128xbf16>, vector<2x128xf32> -> vector<2x128xf32>
    %c0_8 = arith.constant 0 : index
    %c0_9 = arith.constant 0 : index
    %10 = vector.load %arg5[%c0_8, %c0_9] : memref<1x128xf32, #tpu.memory_space<vmem>>, vector<1x128xf32>
    %11 = vector.broadcast %10 : vector<1x128xf32> to vector<2x128xf32>
    %12 = arith.addf %9, %11 : vector<2x128xf32>
    %c0_10 = arith.constant 0 : index
    %c0_11 = arith.constant 0 : index
    %13 = vector.load %arg6[%c0_10, %c0_11] : memref<2x128xf32, #tpu.memory_space<vmem>>, vector<2x128xf32>
    tpu.vector_store %arg6[%c0_10, %c0_11], %12 {strides = array<i32>} : memref<2x128xf32, #tpu.memory_space<vmem>>, vector<2x128xf32>,
    return
  }
  func.func @transform_0(%arg0: i32) -> (i32, i32) {
    %c0_i32 = arith.constant 0 : i32
    %c0_i32_0 = arith.constant 0 : i32
    return %arg0, %c0_i32 : i32, i32
  }
  func.func @transform_1(%arg0: i32) -> (i32, i32) {
    %c0_i32 = arith.constant 0 : i32
    %c0_i32_0 = arith.constant 0 : i32
    %c0_i32_1 = arith.constant 0 : i32
    return %c0_i32, %c0_i32_0 : i32, i32
  }
  func.func @transform_2(%arg0: i32) -> (i32, i32) {
    %c0_i32 = arith.constant 0 : i32
    %c0_i32_0 = arith.constant 0 : i32
    %c0_i32_1 = arith.constant 0 : i32
    return %c0_i32, %c0_i32_0 : i32, i32
  }
  func.func @transform_3(%arg0: i32) -> (i32, i32) {
    %c0_i32 = arith.constant 0 : i32
    %c0_i32_0 = arith.constant 0 : i32
    %c0_i32_1 = arith.constant 0 : i32
    return %c0_i32, %c0_i32_0 : i32, i32
  }
  func.func @transform_4(%arg0: i32) -> (i32, i32) {
    %c0_i32 = arith.constant 0 : i32
    %c0_i32_0 = arith.constant 0 : i32
    %c0_i32_1 = arith.constant 0 : i32
    return %c0_i32, %c0_i32_0 : i32, i32
  }
  func.func @transform_5(%arg0: i32) -> (i32, i32) {
    %c0_i32 = arith.constant 0 : i32
    %c0_i32_0 = arith.constant 0 : i32
    return %arg0, %c0_i32 : i32, i32
  }
}

module attributes {stable_mosaic.version = 11 : i64} {
  func.func @_dense_resident_kernel(%arg0: i32, %arg1: memref<2x32xf32, #tpu.memory_space<vmem>>, %arg2: memref<32x256xbf16, #tpu.memory_space<vmem>>, %arg3: memref<1x256xf32, #tpu.memory_space<vmem>>, %arg4: memref<256x128xbf16, #tpu.memory_space<vmem>>, %arg5: memref<1x128xf32, #tpu.memory_space<vmem>>, %arg6: memref<2x128xf32, #tpu.memory_space<vmem>>) attributes {dimension_semantics = [#tpu.dimension_semantics<parallel>], iteration_bounds = array<i64: 1>, scalar_prefetch = 0 : i64, scratch_operands = 0 : i64, tpu.core_type = #tpu.core_type<tc>, window_params = [{transform_indices = @transform_0, window_bounds = array<i64: 2, 32>}, {pipeline_mode = #tpu.pipeline_mode<synchronous>, transform_indices = @transform_1, window_bounds = array<i64: 32, 256>}, {pipeline_mode = #tpu.pipeline_mode<synchronous>, transform_indices = @transform_2, window_bounds = array<i64: 1, 256>}, {pipeline_mode = #tpu.pipeline_mode<synchronous>, transform_indices = @transform_3, window_bounds = array<i64: 256, 128>}, {pipeline_mode = #tpu.pipeline_mode<synchronous>, transform_indices = @transform_4, window_bounds = array<i64: 1, 128>}, {transform_indices = @transform_5, window_bounds = array<i64: 2, 128>}]} {
    %c0 = arith.constant 0 : index
    %c0_0 = arith.constant 0 : index
    %0 = vector.load %arg1[%c0, %c0_0] : memref<2x32xf32, #tpu.memory_space<vmem>>, vector<2x32xf32>
    %1 = arith.truncf %0 : vector<2x32xf32> to vector<2x32xbf16>
    %c0_1 = arith.constant 0 : index
    %c0_2 = arith.constant 0 : index
    %2 = vector.load %arg2[%c0_1, %c0_2] : memref<32x256xbf16, #tpu.memory_space<vmem>>, vector<32x256xbf16>
    %cst = arith.constant dense<0.000000e+00> : vector<2x256xf32>
    %3 = tpu.matmul %1, %2, %cst {dimension_numbers = #tpu.dot_dimension_numbers<[1], [0], [0], [1], [0, 0, 1, 1], [], []>} : vector<2x32xbf16>, vector<32x256xbf16>, vector<2x256xf32> -> vector<2x256xf32>
    %c0_3 = arith.constant 0 : index
    %c0_4 = arith.constant 0 : index
    %4 = vector.load %arg3[%c0_3, %c0_4] : memref<1x256xf32, #tpu.memory_space<vmem>>, vector<1x256xf32>
    %5 = vector.broadcast %4 : vector<1x256xf32> to vector<2x256xf32>
    %6 = arith.addf %3, %5 : vector<2x256xf32>
    %7 = arith.truncf %6 : vector<2x256xf32> to vector<2x256xbf16>
    %c0_5 = arith.constant 0 : index
    %c0_6 = arith.constant 0 : index
    %8 = vector.load %arg4[%c0_5, %c0_6] : memref<256x128xbf16, #tpu.memory_space<vmem>>, vector<256x128xbf16>
    %cst_7 = arith.constant dense<0.000000e+00> : vector<2x128xf32>
    %9 = tpu.matmul %7, %8, %cst_7 {dimension_numbers = #tpu.dot_dimension_numbers<[1], [0], [0], [1], [0, 0, 1, 1], [], []>} : vector<2x256xbf16>, vector<256x128xbf16>, vector<2x128xf32> -> vector<2x128xf32>
    %c0_8 = arith.constant 0 : index
    %c0_9 = arith.constant 0 : index
    %10 = vector.load %arg5[%c0_8, %c0_9] : memref<1x128xf32, #tpu.memory_space<vmem>>, vector<1x128xf32>
    %11 = vector.broadcast %10 : vector<1x128xf32> to vector<2x128xf32>
    %12 = arith.addf %9, %11 : vector<2x128xf32>
    %c0_10 = arith.constant 0 : index
    %c0_11 = arith.constant 0 : index
    %13 = vector.load %arg6[%c0_10, %c0_11] : memref<2x128xf32, #tpu.memory_space<vmem>>, vector<2x128xf32>
    tpu.vector_store %arg6[%c0_10, %c0_11], %12 {strides = array<i32>} : memref<2x128xf32, #tpu.memory_space<vmem>>, vector<2x128xf32>,
    return
  }
  func.func @transform_0(%arg0: i32) -> (i32, i32) {
    %c0_i32 = arith.constant 0 : i32
    %c0_i32_0 = arith.constant 0 : i32
    return %arg0, %c0_i32 : i32, i32
  }
  func.func @transform_1(%arg0: i32) -> (i32, i32) {
    %c0_i32 = arith.constant 0 : i32
    %c0_i32_0 = arith.constant 0 : i32
    %c0_i32_1 = arith.constant 0 : i32
    return %c0_i32, %c0_i32_0 : i32, i32
  }
  func.func @transform_2(%arg0: i32) -> (i32, i32) {
    %c0_i32 = arith.constant 0 : i32
    %c0_i32_0 = arith.constant 0 : i32
    %c0_i32_1 = arith.constant 0 : i32
    return %c0_i32, %c0_i32_0 : i32, i32
  }
  func.func @transform_3(%arg0: i32) -> (i32, i32) {
    %c0_i32 = arith.constant 0 : i32
    %c0_i32_0 = arith.constant 0 : i32
    %c0_i32_1 = arith.constant 0 : i32
    return %c0_i32, %c0_i32_0 : i32, i32
  }
  func.func @transform_4(%arg0: i32) -> (i32, i32) {
    %c0_i32 = arith.constant 0 : i32
    %c0_i32_0 = arith.constant 0 : i32
    %c0_i32_1 = arith.constant 0 : i32
    return %c0_i32, %c0_i32_0 : i32, i32
  }
  func.func @transform_5(%arg0: i32) -> (i32, i32) {
    %c0_i32 = arith.constant 0 : i32
    %c0_i32_0 = arith.constant 0 : i32
    return %arg0, %c0_i32 : i32, i32
  }
}

</mosaic_0001>

<llo_original>
// kernel: tpu_custom_call.1
$region0: #{tpu_custom_call.1}
  #allocation0 [shape = 'u32[]', space=smem, size = 0x4, offset = 0x4, fixed_abs, tag = 'smem constant byte address 0x4 - core index']
  #allocation1 [shape = 'u32[144,128]{1,0:T(1,128)}', space=vmem, size = 0x12000, scoped, tag = 'internal scratch']
  %s0 = inlined_call_operand.hbm [shape: f32[2,32], index: 0, kind: input, shape index: {}]
  %s1 = inlined_call_operand.hbm [shape: bf16[32,256], index: 1, kind: input, shape index: {}]
  %s2 = inlined_call_operand.vmem [shape: f32[1,256], index: 2, kind: input, shape index: {}]
  %s3 = inlined_call_operand.hbm [shape: bf16[256,128], index: 3, kind: input, shape index: {}]
  %s4 = inlined_call_operand.vmem [shape: f32[1,128], index: 4, kind: input, shape index: {}]
  %s5 = inlined_call_operand.hbm [shape: f32[2,128], index: 5, kind: output, shape index: {}]
  %s6 = sld [smem:[#allocation0]]
  $region42: #{tpu_custom_call.1} parent=0
    _
  %s8 = ssub.s32 1, %s6
  %s9 = scalar_select 0, %s8, %s6
  $region1: #{tpu_custom_call.1} parent=0
    #allocation2 [shape = 'u8[1024]{0}', space=vmem, size = 0x400, scoped, tag = 'input window, operand 0, single buffered']
    #allocation3 [shape = 's32[1]{0}', space=sflag, size = 0x4, scoped, tag = 'scoped memory for tpu_custom_call.1']
    #allocation4 [shape = 's32[1]{0}', space=sflag, size = 0x4, scoped, tag = 'scoped memory for tpu_custom_call.1']
    #allocation5 [shape = 'u8[16384]{0}', space=vmem, size = 0x4000, scoped, tag = 'input window, operand 1, single buffered']
    #allocation6 [shape = 's32[1]{0}', space=sflag, size = 0x4, scoped, tag = 'scoped memory for tpu_custom_call.1']
    #allocation7 [shape = 'u8[65536]{0}', space=vmem, size = 0x10000, scoped, tag = 'input window, operand 3, single buffered']
    #allocation8 [shape = 'u8[1024]{0}', space=vmem, size = 0x400, scoped, tag = 'output window, operand 0, single buffered']
    %10 = vsyncpa [#allocation3], 0
    %11 = vsyncpa [#allocation6], 0
    %12 = vsyncpa [#allocation4], 0
    // Predicated region
    $region2: #{tpu_custom_call.1} parent=1 // pred_check
      _
    $region3: #{tpu_custom_call.1} parent=1 // pred_check_branch
      %14 = sbr.rel (0) target = $region5
    $region4: #{tpu_custom_call.1} parent=1 // pred_region
      %s16 = ssub.s32 32, 32
      %17 = vsyncadd [#allocation3], %s16
      %s19 = sshll.u32 [#allocation2], 4
      %s20 = int_to_ptr.vmem [resolvable:$true] %s19
      %22 = dma.hbm_to_vmem [thread:$0]  %s0, 32, %s20, [#allocation3]
    $region5: #{tpu_custom_call.1} parent=1 // pred_fallthru
      _
    // Predicated region
    $region6: #{tpu_custom_call.1} parent=1 // pred_check
      _
    $region7: #{tpu_custom_call.1} parent=1 // pred_check_branch
      %24 = sbr.rel (0) target = $region9
    $region8: #{tpu_custom_call.1} parent=1 // pred_region
      %s26 = ssub.s32 512, 512
      %27 = vsyncadd [#allocation6], %s26
      %s28 = sshll.u32 [#allocation5], 4
      %s29 = int_to_ptr.vmem [resolvable:$true] %s28
      %34 = dma.hbm_to_vmem [thread:$0]  %s1, 512, %s29, [#allocation6], 128, 128, 8
    $region9: #{tpu_custom_call.1} parent=1 // pred_fallthru
      _
    // Predicated region
    $region10: #{tpu_custom_call.1} parent=1 // pred_check
      _
    $region11: #{tpu_custom_call.1} parent=1 // pred_check_branch
      %36 = sbr.rel (0) target = $region13
    $region12: #{tpu_custom_call.1} parent=1 // pred_region
      _
    $region13: #{tpu_custom_call.1} parent=1 // pred_fallthru
      _
    // Predicated region
    $region14: #{tpu_custom_call.1} parent=1 // pred_check
      _
    $region15: #{tpu_custom_call.1} parent=1 // pred_check_branch
      %38 = sbr.rel (0) target = $region17
    $region16: #{tpu_custom_call.1} parent=1 // pred_region
      %s40 = ssub.s32 2048, 2048
      %41 = vsyncadd [#allocation6], %s40
      %s42 = sshll.u32 [#allocation7], 4
      %s43 = int_to_ptr.vmem [resolvable:$true] %s42
      %48 = dma.hbm_to_vmem [thread:$0]  %s3, 2048, %s43, [#allocation6], 64, 64, 4
    $region17: #{tpu_custom_call.1} parent=1 // pred_fallthru
      _
    // Predicated region
    $region18: #{tpu_custom_call.1} parent=1 // pred_check
      _
    $region19: #{tpu_custom_call.1} parent=1 // pred_check_branch
      %50 = sbr.rel (0) target = $region21
    $region20: #{tpu_custom_call.1} parent=1 // pred_region
      _
    $region21: #{tpu_custom_call.1} parent=1 // pred_fallthru
      _
    // Predicated region
    $region22: #{tpu_custom_call.1} parent=1 // pred_check
      _
    $region23: #{tpu_custom_call.1} parent=1 // pred_check_branch
      %52 = sbr.rel (0) target = $region25
    $region24: #{tpu_custom_call.1} parent=1 // pred_region
      %53 = dma.done [#allocation3], 32
    $region25: #{tpu_custom_call.1} parent=1 // pred_fallthru
      _
    // Predicated region
    $region26: #{tpu_custom_call.1} parent=1 // pred_check
      _
    $region27: #{tpu_custom_call.1} parent=1 // pred_check_branch
      %55 = sbr.rel (0) target = $region29
    $region28: #{tpu_custom_call.1} parent=1 // pred_region
      %56 = dma.done [#allocation6], 512
    $region29: #{tpu_custom_call.1} parent=1 // pred_fallthru
      _
    // Predicated region
    $region30: #{tpu_custom_call.1} parent=1 // pred_check
      _
    $region31: #{tpu_custom_call.1} parent=1 // pred_check_branch
      %58 = sbr.rel (0) target = $region33
    $region32: #{tpu_custom_call.1} parent=1 // pred_region
      %59 = dma.done [#allocation6], 2048
    $region33: #{tpu_custom_call.1} parent=1 // pred_fallthru
      _
    %v61 = vld [vmem:[#allocation2] sm:$0x3]
    %v62 = vpack.c.bf16 %v61, %v61
    %v63 = vld [vmem:[#allocation5] sm:$0xff]
    %v64 = vld [vmem:[#allocation5 + $0x8] sm:$0xff]
    %v65 = vld [vmem:[#allocation5 + $0x10] sm:$0xff]
    %v66 = vld [vmem:[#allocation5 + $0x18] sm:$0xff]
    %v67 = vld [vmem:[%s2] sm:$0x3]
    %v69 = vlaneseq
    %v70 = vshrl.u32 %v69, 7
    %v71 = vsub.s32 0, %v70
    %v72 = vrot.slane %v67, %v71
    %v73 = vlaneseq
    %v74 = vshrl.u32 %v73, 7
    %v75 = vsub.s32 1, %v74
    %v76 = vrot.slane %v67, %v75
    %v83 = vunpack.c.l.b16 %v63
    %v84 = vunpack.c.h.b16 %v63
    %v85 = vunpack.c.l.b16 %v64
    %v86 = vunpack.c.h.b16 %v64
    %v87 = vunpack.c.l.b16 %v65
    %v88 = vunpack.c.h.b16 %v65
    %v89 = vunpack.c.l.b16 %v66
    %v90 = vunpack.c.h.b16 %v66
    %v91 = vpack.c.b16 %v85, %v83
    %v92 = vpack.c.b16 %v86, %v84
    %v93 = vpack.c.b16 %v89, %v87
    %v94 = vpack.c.b16 %v90, %v88
    %vm99 = vcmask 261120
    %v101 = vsel %vm99, %v62, 0
    %103 = vmatprep.subr.bf16.mxu0 0
    %104 = vmatpush1.bf16.msra.mxu0 0
    %105 = vmatprep.subr.bf16.mxu0 0
    %106 = vmatpush1.bf16.msra.mxu0 0
    %107 = vmatprep.subr.bf16.mxu0 0
    %108 = vmatpush1.bf16.msra.mxu0 0
    %109 = vmatprep.subr.bf16.mxu0 0
    %110 = vmatpush1.bf16.msra.mxu0 0
    %111 = vmatprep.subr.bf16.mxu0 0
    %112 = vmatpush1.bf16.msra.mxu0 0
    %113 = vmatprep.subr.bf16.mxu0 0
    %114 = vmatpush1.bf16.msra.mxu0 0
    %115 = vmatprep.subr.bf16.mxu0 %v94
    %116 = vmatpush1.bf16.msra.mxu0 %v93
    %117 = vmatprep.subr.bf16.mxu0 %v92
    %118 = vmatpush1.bf16.msra.mxu0 %v91
    %119 = vmatprep.subr.bf16.mxu0 0
    %120 = vmatpush2.bf16.msra.mxu0 0
    %121 = vmatprep.subr.bf16.mxu0 0
    %122 = vmatpush2.bf16.msra.mxu0 0
    %123 = vmatprep.subr.bf16.mxu0 0
    %124 = vmatpush2.bf16.msra.mxu0 0
    %125 = vmatprep.subr.bf16.mxu0 0
    %126 = vmatpush2.bf16.msra.mxu0 0
    %127 = vmatprep.subr.bf16.mxu0 0
    %128 = vmatpush2.bf16.msra.mxu0 0
    %129 = vmatprep.subr.bf16.mxu0 0
    %130 = vmatpush2.bf16.msra.mxu0 0
    %131 = vmatprep.subr.bf16.mxu0 0
    %132 = vmatpush2.bf16.msra.mxu0 0
    %133 = vmatprep.subr.bf16.mxu0 0
    %134 = vmatpush2.bf16.msra.mxu0 0
    %135 = vmatprep.mubr.bf16.mxu0 0
    %136 = vmatmul.mubr.bf16.gmra.mxu0 %v101
    %v137 = vpop.f32.mrf.mxu0
    %v138 = vadd.f32 %v72, %v137
    %v139 = vpop.f32.mrf.mxu0
    %v140 = vadd.f32 %v76, %v139
    %v141 = vpop.f32.mrf.mxu0
    %v142 = vpop.f32.mrf.mxu0
    %143 = vdwg.mxu0
    %v144 = vpack.c.bf16 %v138, %v138
    %v145 = vpack.c.bf16 %v140, %v140
    %v146 = vld [vmem:[#allocation7] sm:$0xf]
    %v147 = vld [vmem:[#allocation7 + $0x4] sm:$0xf]
    %v148 = vld [vmem:[#allocation7 + $0x8] sm:$0xf]
    %v149 = vld [vmem:[#allocation7 + $0xc] sm:$0xf]
    %v150 = vld [vmem:[#allocation7 + $0x10] sm:$0xf]
    %v151 = vld [vmem:[#allocation7 + $0x14] sm:$0xf]
    %v152 = vld [vmem:[#allocation7 + $0x18] sm:$0xf]
    %v153 = vld [vmem:[#allocation7 + $0x1c] sm:$0xf]
    %v154 = vld [vmem:[#allocation7 + $0x20] sm:$0xf]
    %v155 = vld [vmem:[#allocation7 + $0x24] sm:$0xf]
    %v156 = vld [vmem:[#allocation7 + $0x28] sm:$0xf]
    %v157 = vld [vmem:[#allocation7 + $0x2c] sm:$0xf]
    %v158 = vld [vmem:[#allocation7 + $0x30] sm:$0xf]
    %v159 = vld [vmem:[#allocation7 + $0x34] sm:$0xf]
    %v160 = vld [vmem:[#allocation7 + $0x38] sm:$0xf]
    %v161 = vld [vmem:[#allocation7 + $0x3c] sm:$0xf]
    %v162 = vld [vmem:[#allocation7 + $0x40] sm:$0xf]
    %v163 = vld [vmem:[#allocation7 + $0x44] sm:$0xf]
    %v164 = vld [vmem:[#allocation7 + $0x48] sm:$0xf]
    %v165 = vld [vmem:[#allocation7 + $0x4c] sm:$0xf]
    %v166 = vld [vmem:[#allocation7 + $0x50] sm:$0xf]
    %v167 = vld [vmem:[#allocation7 + $0x54] sm:$0xf]
    %v168 = vld [vmem:[#allocation7 + $0x58] sm:$0xf]
    %v169 = vld [vmem:[#allocation7 + $0x5c] sm:$0xf]
    %v170 = vld [vmem:[#allocation7 + $0x60] sm:$0xf]
    %v171 = vld [vmem:[#allocation7 + $0x64] sm:$0xf]
    %v172 = vld [vmem:[#allocation7 + $0x68] sm:$0xf]
    %v173 = vld [vmem:[#allocation7 + $0x6c] sm:$0xf]
    %v174 = vld [vmem:[#allocation7 + $0x70] sm:$0xf]
    %v175 = vld [vmem:[#allocation7 + $0x74] sm:$0xf]
    %v176 = vld [vmem:[#allocation7 + $0x78] sm:$0xf]
    %v177 = vld [vmem:[#allocation7 + $0x7c] sm:$0xf]
    %v178 = vld [vmem:[%s4] sm:$0x1]
    %v180 = vlaneseq
    %v181 = vshrl.u32 %v180, 7
    %v182 = vsub.s32 0, %v181
    %v183 = vrot.slane %v178, %v182
    %v217 = vunpack.c.l.b16 %v146
    %v218 = vunpack.c.l.b16 %v147
    %v219 = vunpack.c.l.b16 %v148
    %v220 = vunpack.c.l.b16 %v149
    %v221 = vunpack.c.l.b16 %v150
    %v222 = vunpack.c.l.b16 %v151
    %v223 = vunpack.c.l.b16 %v152
    %v224 = vunpack.c.l.b16 %v153
    %v225 = vunpack.c.l.b16 %v154
    %v226 = vunpack.c.l.b16 %v155
    %v227 = vunpack.c.l.b16 %v156
    %v228 = vunpack.c.l.b16 %v157
    %v229 = vunpack.c.l.b16 %v158
    %v230 = vunpack.c.l.b16 %v159
    %v231 = vunpack.c.l.b16 %v160
    %v232 = vunpack.c.l.b16 %v161
    %v233 = vunpack.c.l.b16 %v162
    %v234 = vunpack.c.l.b16 %v163
    %v235 = vunpack.c.l.b16 %v164
    %v236 = vunpack.c.l.b16 %v165
    %v237 = vunpack.c.l.b16 %v166
    %v238 = vunpack.c.l.b16 %v167
    %v239 = vunpack.c.l.b16 %v168
    %v240 = vunpack.c.l.b16 %v169
    %v241 = vunpack.c.l.b16 %v170
    %v242 = vunpack.c.l.b16 %v171
    %v243 = vunpack.c.l.b16 %v172
    %v244 = vunpack.c.l.b16 %v173
    %v245 = vunpack.c.l.b16 %v174
    %v246 = vunpack.c.l.b16 %v175
    %v247 = vunpack.c.l.b16 %v176
    %v248 = vunpack.c.l.b16 %v177
    %v249 = vpack.c.b16 %v218, %v217
    %v250 = vpack.c.b16 %v220, %v219
    %v251 = vpack.c.b16 %v222, %v221
    %v252 = vpack.c.b16 %v224, %v223
    %v253 = vpack.c.b16 %v226, %v225
    %v254 = vpack.c.b16 %v228, %v227
    %v255 = vpack.c.b16 %v230, %v229
    %v256 = vpack.c.b16 %v232, %v231
    %v257 = vpack.c.b16 %v234, %v233
    %v258 = vpack.c.b16 %v236, %v235
    %v259 = vpack.c.b16 %v238, %v237
    %v260 = vpack.c.b16 %v240, %v239
    %v261 = vpack.c.b16 %v242, %v241
    %v262 = vpack.c.b16 %v244, %v243
    %v263 = vpack.c.b16 %v246, %v245
    %v264 = vpack.c.b16 %v248, %v247
    %281 = vmatprep.subr.bf16.mxu0 0
    %282 = vmatpush1.bf16.msra.mxu0 %v256
    %283 = vmatprep.subr.bf16.mxu0 0
    %284 = vmatpush1.bf16.msra.mxu0 %v255
    %285 = vmatprep.subr.bf16.mxu0 0
    %286 = vmatpush1.bf16.msra.mxu0 %v254
    %287 = vmatprep.subr.bf16.mxu0 0
    %288 = vmatpush1.bf16.msra.mxu0 %v253
    %289 = vmatprep.subr.bf16.mxu0 0
    %290 = vmatpush1.bf16.msra.mxu0 %v252
    %291 = vmatprep.subr.bf16.mxu0 0
    %292 = vmatpush1.bf16.msra.mxu0 %v251
    %293 = vmatprep.subr.bf16.mxu0 0
    %294 = vmatpush1.bf16.msra.mxu0 %v250
    %295 = vmatprep.subr.bf16.mxu0 0
    %296 = vmatpush1.bf16.msra.mxu0 %v249
    %297 = vmatprep.subr.bf16.mxu0 0
    %298 = vmatpush2.bf16.msra.mxu0 %v264
    %299 = vmatprep.subr.bf16.mxu0 0
    %300 = vmatpush2.bf16.msra.mxu0 %v263
    %301 = vmatprep.subr.bf16.mxu0 0
    %302 = vmatpush2.bf16.msra.mxu0 %v262
    %303 = vmatprep.subr.bf16.mxu0 0
    %304 = vmatpush2.bf16.msra.mxu0 %v261
    %305 = vmatprep.subr.bf16.mxu0 0
    %306 = vmatpush2.bf16.msra.mxu0 %v260
    %307 = vmatprep.subr.bf16.mxu0 0
    %308 = vmatpush2.bf16.msra.mxu0 %v259
    %309 = vmatprep.subr.bf16.mxu0 0
    %310 = vmatpush2.bf16.msra.mxu0 %v258
    %311 = vmatprep.subr.bf16.mxu0 0
    %312 = vmatpush2.bf16.msra.mxu0 %v257
    %313 = vmatprep.mubr.bf16.mxu0 %v145
    %314 = vmatmul.mubr.bf16.gmra.mxu0 %v144
    %v315 = vpop.f32.mrf.mxu0
    %v316 = vadd.f32 %v183, %v315
    %v317 = vpop.f32.mrf.mxu0
    %v318 = vpop.f32.mrf.mxu0
    %v319 = vpop.f32.mrf.mxu0
    %320 = vdwg.mxu0
    %321 = vst [vmem:[#allocation8] sm:$0x3] %v316
    // Predicated region
    $region34: #{tpu_custom_call.1} parent=1 // pred_check
      _
    $region35: #{tpu_custom_call.1} parent=1 // pred_check_branch
      %323 = sbr.rel (0) target = $region37
    $region36: #{tpu_custom_call.1} parent=1 // pred_region
      %s325 = ssub.s32 32, 32
      %326 = vsyncadd [#allocation4], %s325
      %s328 = sshll.u32 [#allocation8], 4
      %s329 = int_to_ptr.vmem [resolvable:$true] %s328
      %331 = dma.vmem_to_hbm [thread:$0]  %s329, 32, %s5, [#allocation4]
    $region37: #{tpu_custom_call.1} parent=1 // pred_fallthru
      _
    // Predicated region
    $region38: #{tpu_custom_call.1} parent=1 // pred_check
      _
    $region39: #{tpu_custom_call.1} parent=1 // pred_check_branch
      %333 = sbr.rel (0) target = $region41
    $region40: #{tpu_custom_call.1} parent=1 // pred_region
      %334 = dma.done [#allocation4], 32
    $region41: #{tpu_custom_call.1} parent=1 // pred_fallthru
      _
    %335 = vsyncpa [#allocation3], 1
    %336 = vsyncpa [#allocation6], 1
    %337 = vsyncpa [#allocation4], 1

// kernel: tpu_custom_call.1
$region0: #{tpu_custom_call.1}
  #allocation0 [shape = 'u32[]', space=smem, size = 0x4, offset = 0x4, fixed_abs, tag = 'smem constant byte address 0x4 - core index']
  #allocation1 [shape = 'u32[144,128]{1,0:T(1,128)}', space=vmem, size = 0x12000, scoped, tag = 'internal scratch']
  %s0 = inlined_call_operand.hbm [shape: f32[2,32], index: 0, kind: input, shape index: {}]
  %s1 = inlined_call_operand.hbm [shape: bf16[32,256], index: 1, kind: input, shape index: {}]
  %s2 = inlined_call_operand.vmem [shape: f32[1,256], index: 2, kind: input, shape index: {}]
  %s3 = inlined_call_operand.hbm [shape: bf16[256,128], index: 3, kind: input, shape index: {}]
  %s4 = inlined_call_operand.vmem [shape: f32[1,128], index: 4, kind: input, shape index: {}]
  %s5 = inlined_call_operand.hbm [shape: f32[2,128], index: 5, kind: output, shape index: {}]
  %s6 = sld [smem:[#allocation0]]
  $region42: #{tpu_custom_call.1} parent=0
    _
  %s8 = ssub.s32 1, %s6
  %s9 = scalar_select 0, %s8, %s6
  $region1: #{tpu_custom_call.1} parent=0
    #allocation2 [shape = 'u8[1024]{0}', space=vmem, size = 0x400, scoped, tag = 'input window, operand 0, single buffered']
    #allocation3 [shape = 's32[1]{0}', space=sflag, size = 0x4, scoped, tag = 'scoped memory for tpu_custom_call.1']
    #allocation4 [shape = 's32[1]{0}', space=sflag, size = 0x4, scoped, tag = 'scoped memory for tpu_custom_call.1']
    #allocation5 [shape = 'u8[16384]{0}', space=vmem, size = 0x4000, scoped, tag = 'input window, operand 1, single buffered']
    #allocation6 [shape = 's32[1]{0}', space=sflag, size = 0x4, scoped, tag = 'scoped memory for tpu_custom_call.1']
    #allocation7 [shape = 'u8[65536]{0}', space=vmem, size = 0x10000, scoped, tag = 'input window, operand 3, single buffered']
    #allocation8 [shape = 'u8[1024]{0}', space=vmem, size = 0x400, scoped, tag = 'output window, operand 0, single buffered']
    %10 = vsyncpa [#allocation3], 0
    %11 = vsyncpa [#allocation6], 0
    %12 = vsyncpa [#allocation4], 0
    // Predicated region
    $region2: #{tpu_custom_call.1} parent=1 // pred_check
      _
    $region3: #{tpu_custom_call.1} parent=1 // pred_check_branch
      %14 = sbr.rel (0) target = $region5
    $region4: #{tpu_custom_call.1} parent=1 // pred_region
      %s16 = ssub.s32 32, 32
      %17 = vsyncadd [#allocation3], %s16
      %s19 = sshll.u32 [#allocation2], 4
      %s20 = int_to_ptr.vmem [resolvable:$true] %s19
      %22 = dma.hbm_to_vmem [thread:$0]  %s0, 32, %s20, [#allocation3]
    $region5: #{tpu_custom_call.1} parent=1 // pred_fallthru
      _
    // Predicated region
    $region6: #{tpu_custom_call.1} parent=1 // pred_check
      _
    $region7: #{tpu_custom_call.1} parent=1 // pred_check_branch
      %24 = sbr.rel (0) target = $region9
    $region8: #{tpu_custom_call.1} parent=1 // pred_region
      %s26 = ssub.s32 512, 512
      %27 = vsyncadd [#allocation6], %s26
      %s28 = sshll.u32 [#allocation5], 4
      %s29 = int_to_ptr.vmem [resolvable:$true] %s28
      %34 = dma.hbm_to_vmem [thread:$0]  %s1, 512, %s29, [#allocation6], 128, 128, 8
    $region9: #{tpu_custom_call.1} parent=1 // pred_fallthru
      _
    // Predicated region
    $region10: #{tpu_custom_call.1} parent=1 // pred_check
      _
    $region11: #{tpu_custom_call.1} parent=1 // pred_check_branch
      %36 = sbr.rel (0) target = $region13
    $region12: #{tpu_custom_call.1} parent=1 // pred_region
      _
    $region13: #{tpu_custom_call.1} parent=1 // pred_fallthru
      _
    // Predicated region
    $region14: #{tpu_custom_call.1} parent=1 // pred_check
      _
    $region15: #{tpu_custom_call.1} parent=1 // pred_check_branch
      %38 = sbr.rel (0) target = $region17
    $region16: #{tpu_custom_call.1} parent=1 // pred_region
      %s40 = ssub.s32 2048, 2048
      %41 = vsyncadd [#allocation6], %s40
      %s42 = sshll.u32 [#allocation7], 4
      %s43 = int_to_ptr.vmem [resolvable:$true] %s42
      %48 = dma.hbm_to_vmem [thread:$0]  %s3, 2048, %s43, [#allocation6], 64, 64, 4
    $region17: #{tpu_custom_call.1} parent=1 // pred_fallthru
      _
    // Predicated region
    $region18: #{tpu_custom_call.1} parent=1 // pred_check
      _
    $region19: #{tpu_custom_call.1} parent=1 // pred_check_branch
      %50 = sbr.rel (0) target = $region21
    $region20: #{tpu_custom_call.1} parent=1 // pred_region
      _
    $region21: #{tpu_custom_call.1} parent=1 // pred_fallthru
      _
    // Predicated region
    $region22: #{tpu_custom_call.1} parent=1 // pred_check
      _
    $region23: #{tpu_custom_call.1} parent=1 // pred_check_branch
      %52 = sbr.rel (0) target = $region25
    $region24: #{tpu_custom_call.1} parent=1 // pred_region
      %53 = dma.done [#allocation3], 32
    $region25: #{tpu_custom_call.1} parent=1 // pred_fallthru
      _
    // Predicated region
    $region26: #{tpu_custom_call.1} parent=1 // pred_check
      _
    $region27: #{tpu_custom_call.1} parent=1 // pred_check_branch
      %55 = sbr.rel (0) target = $region29
    $region28: #{tpu_custom_call.1} parent=1 // pred_region
      %56 = dma.done [#allocation6], 512
    $region29: #{tpu_custom_call.1} parent=1 // pred_fallthru
      _
    // Predicated region
    $region30: #{tpu_custom_call.1} parent=1 // pred_check
      _
    $region31: #{tpu_custom_call.1} parent=1 // pred_check_branch
      %58 = sbr.rel (0) target = $region33
    $region32: #{tpu_custom_call.1} parent=1 // pred_region
      %59 = dma.done [#allocation6], 2048
    $region33: #{tpu_custom_call.1} parent=1 // pred_fallthru
      _
    %v61 = vld [vmem:[#allocation2] sm:$0x3]
    %v62 = vpack.c.bf16 %v61, %v61
    %v63 = vld [vmem:[#allocation5] sm:$0xff]
    %v64 = vld [vmem:[#allocation5 + $0x8] sm:$0xff]
    %v65 = vld [vmem:[#allocation5 + $0x10] sm:$0xff]
    %v66 = vld [vmem:[#allocation5 + $0x18] sm:$0xff]
    %v67 = vld [vmem:[%s2] sm:$0x3]
    %v69 = vlaneseq
    %v70 = vshrl.u32 %v69, 7
    %v71 = vsub.s32 0, %v70
    %v72 = vrot.slane %v67, %v71
    %v73 = vlaneseq
    %v74 = vshrl.u32 %v73, 7
    %v75 = vsub.s32 1, %v74
    %v76 = vrot.slane %v67, %v75
    %v83 = vunpack.c.l.b16 %v63
    %v84 = vunpack.c.h.b16 %v63
    %v85 = vunpack.c.l.b16 %v64
    %v86 = vunpack.c.h.b16 %v64
    %v87 = vunpack.c.l.b16 %v65
    %v88 = vunpack.c.h.b16 %v65
    %v89 = vunpack.c.l.b16 %v66
    %v90 = vunpack.c.h.b16 %v66
    %v91 = vpack.c.b16 %v85, %v83
    %v92 = vpack.c.b16 %v86, %v84
    %v93 = vpack.c.b16 %v89, %v87
    %v94 = vpack.c.b16 %v90, %v88
    %vm99 = vcmask 261120
    %v101 = vsel %vm99, %v62, 0
    %103 = vmatprep.subr.bf16.mxu0 0
    %104 = vmatpush1.bf16.msra.mxu0 0
    %105 = vmatprep.subr.bf16.mxu0 0
    %106 = vmatpush1.bf16.msra.mxu0 0
    %107 = vmatprep.subr.bf16.mxu0 0
    %108 = vmatpush1.bf16.msra.mxu0 0
    %109 = vmatprep.subr.bf16.mxu0 0
    %110 = vmatpush1.bf16.msra.mxu0 0
    %111 = vmatprep.subr.bf16.mxu0 0
    %112 = vmatpush1.bf16.msra.mxu0 0
    %113 = vmatprep.subr.bf16.mxu0 0
    %114 = vmatpush1.bf16.msra.mxu0 0
    %115 = vmatprep.subr.bf16.mxu0 %v94
    %116 = vmatpush1.bf16.msra.mxu0 %v93
    %117 = vmatprep.subr.bf16.mxu0 %v92
    %118 = vmatpush1.bf16.msra.mxu0 %v91
    %119 = vmatprep.subr.bf16.mxu0 0
    %120 = vmatpush2.bf16.msra.mxu0 0
    %121 = vmatprep.subr.bf16.mxu0 0
    %122 = vmatpush2.bf16.msra.mxu0 0
    %123 = vmatprep.subr.bf16.mxu0 0
    %124 = vmatpush2.bf16.msra.mxu0 0
    %125 = vmatprep.subr.bf16.mxu0 0
    %126 = vmatpush2.bf16.msra.mxu0 0
    %127 = vmatprep.subr.bf16.mxu0 0
    %128 = vmatpush2.bf16.msra.mxu0 0
    %129 = vmatprep.subr.bf16.mxu0 0
    %130 = vmatpush2.bf16.msra.mxu0 0
    %131 = vmatprep.subr.bf16.mxu0 0
    %132 = vmatpush2.bf16.msra.mxu0 0
    %133 = vmatprep.subr.bf16.mxu0 0
    %134 = vmatpush2.bf16.msra.mxu0 0
    %135 = vmatprep.mubr.bf16.mxu0 0
    %136 = vmatmul.mubr.bf16.gmra.mxu0 %v101
    %v137 = vpop.f32.mrf.mxu0
    %v138 = vadd.f32 %v72, %v137
    %v139 = vpop.f32.mrf.mxu0
    %v140 = vadd.f32 %v76, %v139
    %v141 = vpop.f32.mrf.mxu0
    %v142 = vpop.f32.mrf.mxu0
    %143 = vdwg.mxu0
    %v144 = vpack.c.bf16 %v138, %v138
    %v145 = vpack.c.bf16 %v140, %v140
    %v146 = vld [vmem:[#allocation7] sm:$0xf]
    %v147 = vld [vmem:[#allocation7 + $0x4] sm:$0xf]
    %v148 = vld [vmem:[#allocation7 + $0x8] sm:$0xf]
    %v149 = vld [vmem:[#allocation7 + $0xc] sm:$0xf]
    %v150 = vld [vmem:[#allocation7 + $0x10] sm:$0xf]
    %v151 = vld [vmem:[#allocation7 + $0x14] sm:$0xf]
    %v152 = vld [vmem:[#allocation7 + $0x18] sm:$0xf]
    %v153 = vld [vmem:[#allocation7 + $0x1c] sm:$0xf]
    %v154 = vld [vmem:[#allocation7 + $0x20] sm:$0xf]
    %v155 = vld [vmem:[#allocation7 + $0x24] sm:$0xf]
    %v156 = vld [vmem:[#allocation7 + $0x28] sm:$0xf]
    %v157 = vld [vmem:[#allocation7 + $0x2c] sm:$0xf]
    %v158 = vld [vmem:[#allocation7 + $0x30] sm:$0xf]
    %v159 = vld [vmem:[#allocation7 + $0x34] sm:$0xf]
    %v160 = vld [vmem:[#allocation7 + $0x38] sm:$0xf]
    %v161 = vld [vmem:[#allocation7 + $0x3c] sm:$0xf]
    %v162 = vld [vmem:[#allocation7 + $0x40] sm:$0xf]
    %v163 = vld [vmem:[#allocation7 + $0x44] sm:$0xf]
    %v164 = vld [vmem:[#allocation7 + $0x48] sm:$0xf]
    %v165 = vld [vmem:[#allocation7 + $0x4c] sm:$0xf]
    %v166 = vld [vmem:[#allocation7 + $0x50] sm:$0xf]
    %v167 = vld [vmem:[#allocation7 + $0x54] sm:$0xf]
    %v168 = vld [vmem:[#allocation7 + $0x58] sm:$0xf]
    %v169 = vld [vmem:[#allocation7 + $0x5c] sm:$0xf]
    %v170 = vld [vmem:[#allocation7 + $0x60] sm:$0xf]
    %v171 = vld [vmem:[#allocation7 + $0x64] sm:$0xf]
    %v172 = vld [vmem:[#allocation7 + $0x68] sm:$0xf]
    %v173 = vld [vmem:[#allocation7 + $0x6c] sm:$0xf]
    %v174 = vld [vmem:[#allocation7 + $0x70] sm:$0xf]
    %v175 = vld [vmem:[#allocation7 + $0x74] sm:$0xf]
    %v176 = vld [vmem:[#allocation7 + $0x78] sm:$0xf]
    %v177 = vld [vmem:[#allocation7 + $0x7c] sm:$0xf]
    %v178 = vld [vmem:[%s4] sm:$0x1]
    %v180 = vlaneseq
    %v181 = vshrl.u32 %v180, 7
    %v182 = vsub.s32 0, %v181
    %v183 = vrot.slane %v178, %v182
    %v217 = vunpack.c.l.b16 %v146
    %v218 = vunpack.c.l.b16 %v147
    %v219 = vunpack.c.l.b16 %v148
    %v220 = vunpack.c.l.b16 %v149
    %v221 = vunpack.c.l.b16 %v150
    %v222 = vunpack.c.l.b16 %v151
    %v223 = vunpack.c.l.b16 %v152
    %v224 = vunpack.c.l.b16 %v153
    %v225 = vunpack.c.l.b16 %v154
    %v226 = vunpack.c.l.b16 %v155
    %v227 = vunpack.c.l.b16 %v156
    %v228 = vunpack.c.l.b16 %v157
    %v229 = vunpack.c.l.b16 %v158
    %v230 = vunpack.c.l.b16 %v159
    %v231 = vunpack.c.l.b16 %v160
    %v232 = vunpack.c.l.b16 %v161
    %v233 = vunpack.c.l.b16 %v162
    %v234 = vunpack.c.l.b16 %v163
    %v235 = vunpack.c.l.b16 %v164
    %v236 = vunpack.c.l.b16 %v165
    %v237 = vunpack.c.l.b16 %v166
    %v238 = vunpack.c.l.b16 %v167
    %v239 = vunpack.c.l.b16 %v168
    %v240 = vunpack.c.l.b16 %v169
    %v241 = vunpack.c.l.b16 %v170
    %v242 = vunpack.c.l.b16 %v171
    %v243 = vunpack.c.l.b16 %v172
    %v244 = vunpack.c.l.b16 %v173
    %v245 = vunpack.c.l.b16 %v174
    %v246 = vunpack.c.l.b16 %v175
    %v247 = vunpack.c.l.b16 %v176
    %v248 = vunpack.c.l.b16 %v177
    %v249 = vpack.c.b16 %v218, %v217
    %v250 = vpack.c.b16 %v220, %v219
    %v251 = vpack.c.b16 %v222, %v221
    %v252 = vpack.c.b16 %v224, %v223
    %v253 = vpack.c.b16 %v226, %v225
    %v254 = vpack.c.b16 %v228, %v227
    %v255 = vpack.c.b16 %v230, %v229
    %v256 = vpack.c.b16 %v232, %v231
    %v257 = vpack.c.b16 %v234, %v233
    %v258 = vpack.c.b16 %v236, %v235
    %v259 = vpack.c.b16 %v238, %v237
    %v260 = vpack.c.b16 %v240, %v239
    %v261 = vpack.c.b16 %v242, %v241
    %v262 = vpack.c.b16 %v244, %v243
    %v263 = vpack.c.b16 %v246, %v245
    %v264 = vpack.c.b16 %v248, %v247
    %281 = vmatprep.subr.bf16.mxu0 0
    %282 = vmatpush1.bf16.msra.mxu0 %v256
    %283 = vmatprep.subr.bf16.mxu0 0
    %284 = vmatpush1.bf16.msra.mxu0 %v255
    %285 = vmatprep.subr.bf16.mxu0 0
    %286 = vmatpush1.bf16.msra.mxu0 %v254
    %287 = vmatprep.subr.bf16.mxu0 0
    %288 = vmatpush1.bf16.msra.mxu0 %v253
    %289 = vmatprep.subr.bf16.mxu0 0
    %290 = vmatpush1.bf16.msra.mxu0 %v252
    %291 = vmatprep.subr.bf16.mxu0 0
    %292 = vmatpush1.bf16.msra.mxu0 %v251
    %293 = vmatprep.subr.bf16.mxu0 0
    %294 = vmatpush1.bf16.msra.mxu0 %v250
    %295 = vmatprep.subr.bf16.mxu0 0
    %296 = vmatpush1.bf16.msra.mxu0 %v249
    %297 = vmatprep.subr.bf16.mxu0 0
    %298 = vmatpush2.bf16.msra.mxu0 %v264
    %299 = vmatprep.subr.bf16.mxu0 0
    %300 = vmatpush2.bf16.msra.mxu0 %v263
    %301 = vmatprep.subr.bf16.mxu0 0
    %302 = vmatpush2.bf16.msra.mxu0 %v262
    %303 = vmatprep.subr.bf16.mxu0 0
    %304 = vmatpush2.bf16.msra.mxu0 %v261
    %305 = vmatprep.subr.bf16.mxu0 0
    %306 = vmatpush2.bf16.msra.mxu0 %v260
    %307 = vmatprep.subr.bf16.mxu0 0
    %308 = vmatpush2.bf16.msra.mxu0 %v259
    %309 = vmatprep.subr.bf16.mxu0 0
    %310 = vmatpush2.bf16.msra.mxu0 %v258
    %311 = vmatprep.subr.bf16.mxu0 0
    %312 = vmatpush2.bf16.msra.mxu0 %v257
    %313 = vmatprep.mubr.bf16.mxu0 %v145
    %314 = vmatmul.mubr.bf16.gmra.mxu0 %v144
    %v315 = vpop.f32.mrf.mxu0
    %v316 = vadd.f32 %v183, %v315
    %v317 = vpop.f32.mrf.mxu0
    %v318 = vpop.f32.mrf.mxu0
    %v319 = vpop.f32.mrf.mxu0
    %320 = vdwg.mxu0
    %321 = vst [vmem:[#allocation8] sm:$0x3] %v316
    // Predicated region
    $region34: #{tpu_custom_call.1} parent=1 // pred_check
      _
    $region35: #{tpu_custom_call.1} parent=1 // pred_check_branch
      %323 = sbr.rel (0) target = $region37
    $region36: #{tpu_custom_call.1} parent=1 // pred_region
      %s325 = ssub.s32 32, 32
      %326 = vsyncadd [#allocation4], %s325
      %s328 = sshll.u32 [#allocation8], 4
      %s329 = int_to_ptr.vmem [resolvable:$true] %s328
      %331 = dma.vmem_to_hbm [thread:$0]  %s329, 32, %s5, [#allocation4]
    $region37: #{tpu_custom_call.1} parent=1 // pred_fallthru
      _
    // Predicated region
    $region38: #{tpu_custom_call.1} parent=1 // pred_check
      _
    $region39: #{tpu_custom_call.1} parent=1 // pred_check_branch
      %333 = sbr.rel (0) target = $region41
    $region40: #{tpu_custom_call.1} parent=1 // pred_region
      %334 = dma.done [#allocation4], 32
    $region41: #{tpu_custom_call.1} parent=1 // pred_fallthru
      _
    %335 = vsyncpa [#allocation3], 1
    %336 = vsyncpa [#allocation6], 1
    %337 = vsyncpa [#allocation4], 1

</llo_original>
